<compile_context>
chip_gen: v6e
topology: v6e:2x2x1
jax: 0.10.0
libtpu: 0.0.40
codegen_flags: <defaults>
</compile_context>

<pallas_src>
import functools
import math

import jax
import jax.numpy as jnp
from jax import lax
from jax.experimental import pallas as pl
from jax.experimental.pallas import tpu as pltpu

HIDDEN = 100
HIDDEN_PAD = 128  # hidden size zero-padded to one full lane group


def _round_up(n, m):
    return ((n + m - 1) // m) * m


def basenn_kernel(x_ref, w1_ref, b1_ref, w2_ref, b2_ref, o_ref, *,
                  chunk, n_chunks):
    # x_ref : [tb, n_in]   natural layout (batch on sublanes)
    # w1_ref: [n_in, 128]  fc1 weights, hidden on lanes (resident)
    # b1_ref: [1, 128]     f32
    # w2_ref: [1, 128]     f32
    # b2_ref: [1]          SMEM scalar
    # o_ref : [1, tb]      lane-dense output row
    w1 = w1_ref[...]
    b1 = b1_ref[...]
    w2 = w2_ref[...]
    b2 = b2_ref[0]

    def body(c, carry):
        r0 = pl.multiple_of(c * chunk, chunk)
        xc = x_ref[pl.ds(r0, chunk), :]                          # [chunk, n_in]
        # fc1 (MXU): [chunk, n_in] x [n_in, 128] -> [chunk, 128] f32
        h = lax.dot_general(xc, w1,
                            dimension_numbers=(((1,), (0,)), ((), ())),
                            preferred_element_type=jnp.float32)
        h = jnp.maximum(h + b1, 0.0)                             # bias + ReLU (VPU)
        # fc2 (MXU, contract-last-dims): [1,128] x [chunk,128]^T -> [1, chunk]
        y = lax.dot_general(w2, h,
                            dimension_numbers=(((1,), (1,)), ((), ())),
                            preferred_element_type=jnp.float32)
        z = y + b2
        o_ref[:, pl.ds(r0, chunk)] = 1.0 / (1.0 + jnp.exp(-z))   # sigmoid (EUP)
        return carry

    lax.fori_loop(0, n_chunks, body, 0, unroll=bool(n_chunks <= 32))


def basenn_forward(x, w1, b1, w2, b2, *, block_batch=8192, compute_dtype=None):
    """BaseNN forward.

    x : [B, n_inputs]
    w1: [100, n_inputs], b1: [100]   (torch fc1 layout)
    w2: [1, 100],        b2: [1]     (torch fc2 layout)
    returns [B, 1] f32

    compute_dtype=None streams x at its own dtype (no extra pass over x);
    pass bf16 x or compute_dtype=jnp.bfloat16 to halve the x HBM stream.
    """
    B, n_in = x.shape
    assert w1.shape == (HIDDEN, n_in)

    cd = jnp.dtype(x.dtype) if compute_dtype is None else jnp.dtype(compute_dtype)
    if x.dtype != cd:
        # NOTE: extra pass over x; prefer handing in bf16 directly.
        x = x.astype(cd)

    # ---- batch tile size -------------------------------------------------
    tb = max(128, _round_up(min(int(block_batch), B), 128))
    # Cap so double-buffered x tile (lane-padded in VMEM) + output stays well
    # inside scoped VMEM on every generation.
    lanes_in = max(128, _round_up(n_in, 128))
    bytes_per_row = 2 * lanes_in * cd.itemsize + 2 * 8 * 4     # x (2 bufs) + out
    max_tb = max(128, ((24 * 1024 * 1024) // bytes_per_row) // 128 * 128)
    tb = min(tb, max_tb)
    # Prefer >= 2 grid steps when possible so ("parallel",) can use both
    # TensorCores on v7x (and the pipeline has something to overlap).
    if B > 128 and -(-B // tb) == 1:
        tb = max(128, _round_up(-(-B // 2), 128))
    grid_n = -(-B // tb)
    B_pad = grid_n * tb

    # Tiny batches (B <= 128): zero-pad so the single block is fully in
    # bounds (trivially cheap).  For grid_n >= 2, a ragged last tile just
    # reads garbage rows (row-independent math) whose outputs land in the
    # padded output columns and are sliced off below.
    x_in = x
    if grid_n == 1 and B_pad != B:
        x_in = jnp.zeros((B_pad, n_in), x.dtype).at[:B, :].set(x)

    chunk = 256 if tb % 256 == 0 else 128
    n_chunks = tb // chunk

    # ---- pack parameters (hidden 100 -> 128, zero-padded => exact) --------
    w1_p = jnp.zeros((n_in, HIDDEN_PAD), cd).at[:, :HIDDEN].set(
        w1.T.astype(cd))                                        # [n_in, 128]
    b1_p = jnp.zeros((1, HIDDEN_PAD), jnp.float32).at[0, :HIDDEN].set(
        b1.astype(jnp.float32))                                 # [1, 128]
    w2_p = jnp.zeros((1, HIDDEN_PAD), jnp.float32).at[0, :HIDDEN].set(
        w2.reshape(-1).astype(jnp.float32))                     # [1, 128]
    b2_p = b2.reshape((1,)).astype(jnp.float32)                 # SMEM scalar

    kernel = functools.partial(basenn_kernel, chunk=chunk, n_chunks=n_chunks)

    out = pl.pallas_call(
        kernel,
        out_shape=jax.ShapeDtypeStruct((1, B_pad), jnp.float32),
        grid_spec=pltpu.PrefetchScalarGridSpec(
            num_scalar_prefetch=0,
            grid=(grid_n,),
            in_specs=[
                pl.BlockSpec((tb, n_in), lambda i: (i, 0)),            # x tile
                pl.BlockSpec((n_in, HIDDEN_PAD), lambda i: (0, 0)),    # W1
                pl.BlockSpec((1, HIDDEN_PAD), lambda i: (0, 0)),       # b1
                pl.BlockSpec((1, HIDDEN_PAD), lambda i: (0, 0)),       # W2
                pl.BlockSpec(memory_space=pltpu.MemorySpace.SMEM),     # b2
            ],
            out_specs=pl.BlockSpec((1, tb), lambda i: (0, i)),         # dense out
        ),
        compiler_params=pltpu.CompilerParams(
            dimension_semantics=("parallel",),
            vmem_limit_bytes=32 * 1024 * 1024),
    )(x_in, w1_p, b1_p, w2_p, b2_p)

    # back to the module's [B, 1] layout (drop batch padding).
    return out[0, :B].reshape(B, 1)


def init_basenn_params(key, n_inputs=1, hidden=HIDDEN):
    """PyTorch nn.Linear default init: U[-1/sqrt(fan_in), +1/sqrt(fan_in)]."""
    k1, k2, k3, k4 = jax.random.split(key, 4)
    bound1 = 1.0 / math.sqrt(n_inputs)
    bound2 = 1.0 / math.sqrt(hidden)
    w1 = jax.random.uniform(k1, (hidden, n_inputs), jnp.float32, -bound1, bound1)
    b1 = jax.random.uniform(k2, (hidden,), jnp.float32, -bound1, bound1)
    w2 = jax.random.uniform(k3, (1, hidden), jnp.float32, -bound2, bound2)
    b2 = jax.random.uniform(k4, (1,), jnp.float32, -bound2, bound2)
    return w1, b1, w2, b2


def _reference(x, w1, b1, w2, b2):
    return jax.nn.sigmoid(jnp.maximum(x @ w1.T + b1, 0.0) @ w2.T + b2)


if __name__ == "__main__":
    key = jax.random.PRNGKey(0)
    kx, kx2, kp = jax.random.split(key, 3)

    n_inputs = 4      # BaseNN(n_inputs=4)
    batch = 8

    x = jax.random.normal(kx, (batch, n_inputs), dtype=jnp.float32)
    w1, b1, w2, b2 = init_basenn_params(kp, n_inputs=n_inputs)
    ref = _reference(x, w1, b1, w2, b2)

    # 1) f32 stream, tiny batch (single padded tile).
    out32 = jax.block_until_ready(basenn_forward(x, w1, b1, w2, b2))
    assert out32.shape == (batch, 1)
    assert bool(jnp.all(jnp.isfinite(out32)))
    assert jnp.allclose(out32, ref, atol=1e-4, rtol=1e-4)

    # 2) bf16 input/W1 stream (looser tolerance: expected bf16 rounding).
    out16 = jax.block_until_ready(
        basenn_forward(x, w1, b1, w2, b2, compute_dtype=jnp.bfloat16))
    assert out16.shape == (batch, 1)
    assert jnp.allclose(out16, ref, atol=2e-2, rtol=2e-2)

    # 3) ragged multi-tile batch: exercises grid=2, the chunked inner loop
    #    and the partial last tile.
    batch2 = 1000
    x2 = jax.random.normal(kx2, (batch2, n_inputs), dtype=jnp.float32)
    ref2 = _reference(x2, w1, b1, w2, b2)
    out2 = jax.block_until_ready(basenn_forward(x2, w1, b1, w2, b2))
    assert out2.shape == (batch2, 1)
    assert jnp.allclose(out2, ref2, atol=1e-4, rtol=1e-4)

    print("KERNEL_OK")
</pallas_src>

<mosaic_0001>
module attributes {stable_mosaic.version = 11 : i64} {
  func.func @basenn_kernel(%arg0: i32, %arg1: memref<128x4xf32, #tpu.memory_space<vmem>>, %arg2: memref<4x128xf32, #tpu.memory_space<vmem>>, %arg3: memref<1x128xf32, #tpu.memory_space<vmem>>, %arg4: memref<1x128xf32, #tpu.memory_space<vmem>>, %arg5: memref<1xf32, #tpu.memory_space<smem>>, %arg6: memref<1x128xf32, #tpu.memory_space<vmem>>) attributes {dimension_semantics = [#tpu.dimension_semantics<parallel>], iteration_bounds = array<i64: 1>, scalar_prefetch = 0 : i64, scratch_operands = 0 : i64, tpu.core_type = #tpu.core_type<tc>, window_params = [{transform_indices = @transform_0, window_bounds = array<i64: 128, 4>}, {pipeline_mode = #tpu.pipeline_mode<synchronous>, transform_indices = @transform_1, window_bounds = array<i64: 4, 128>}, {pipeline_mode = #tpu.pipeline_mode<synchronous>, transform_indices = @transform_2, window_bounds = array<i64: 1, 128>}, {pipeline_mode = #tpu.pipeline_mode<synchronous>, transform_indices = @transform_3, window_bounds = array<i64: 1, 128>}, {transform_indices = @transform_4, window_bounds = array<i64: 1>}, {transform_indices = @transform_5, window_bounds = array<i64: 1, 128>}]} {
    %c0 = arith.constant 0 : index
    %c0_0 = arith.constant 0 : index
    %0 = vector.load %arg2[%c0, %c0_0] : memref<4x128xf32, #tpu.memory_space<vmem>>, vector<4x128xf32>
    %c0_1 = arith.constant 0 : index
    %c0_2 = arith.constant 0 : index
    %1 = vector.load %arg3[%c0_1, %c0_2] : memref<1x128xf32, #tpu.memory_space<vmem>>, vector<1x128xf32>
    %c0_3 = arith.constant 0 : index
    %c0_4 = arith.constant 0 : index
    %2 = vector.load %arg4[%c0_3, %c0_4] : memref<1x128xf32, #tpu.memory_space<vmem>>, vector<1x128xf32>
    %c0_5 = arith.constant 0 : index
    %3 = memref.load %arg5[%c0_5] : memref<1xf32, #tpu.memory_space<smem>>
    %c0_i32 = arith.constant 0 : i32
    %c128_i32 = arith.constant 128 : i32
    %4 = arith.muli %c0_i32, %c128_i32 : i32
    %5 = tpu.assume_multiple %4, 128 : i32
    %6 = arith.index_cast %5 : i32 to index
    %c0_6 = arith.constant 0 : index
    %7 = vector.load %arg1[%6, %c0_6] : memref<128x4xf32, #tpu.memory_space<vmem>>, vector<128x4xf32>
    %cst = arith.constant dense<0.000000e+00> : vector<128x128xf32>
    %8 = tpu.matmul %7, %0, %cst {dimension_numbers = #tpu.dot_dimension_numbers<[1], [0], [0], [1], [0, 0, 1, 1], [], []>} : vector<128x4xf32>, vector<4x128xf32>, vector<128x128xf32> -> vector<128x128xf32>
    %9 = vector.broadcast %1 : vector<1x128xf32> to vector<128x128xf32>
    %10 = arith.addf %8, %9 : vector<128x128xf32>
    %cst_7 = arith.constant 0.000000e+00 : f32
    %11 = vector.broadcast %cst_7 : f32 to vector<128x128xf32>
    %12 = arith.maximumf %10, %11 : vector<128x128xf32>
    %cst_8 = arith.constant dense<0.000000e+00> : vector<1x128xf32>
    %13 = tpu.matmul %2, %12, %cst_8 {dimension_numbers = #tpu.dot_dimension_numbers<[1], [1], [0], [0], [0, 0, 1, 0], [], []>} : vector<1x128xf32>, vector<128x128xf32>, vector<1x128xf32> -> vector<1x128xf32>
    %14 = vector.broadcast %3 : f32 to vector<1x128xf32>
    %15 = arith.addf %13, %14 : vector<1x128xf32>
    %cst_9 = arith.constant 0.000000e+00 : f32
    %16 = vector.broadcast %cst_9 : f32 to vector<1x128xf32>
    %17 = arith.subf %16, %15 : vector<1x128xf32>
    %18 = math.exp %17 : vector<1x128xf32>
    %cst_10 = arith.constant 1.000000e+00 : f32
    %19 = vector.broadcast %cst_10 : f32 to vector<1x128xf32>
    %20 = arith.addf %19, %18 : vector<1x128xf32>
    %cst_11 = arith.constant 1.000000e+00 : f32
    %21 = vector.broadcast %cst_11 : f32 to vector<1x128xf32>
    %22 = arith.divf %21, %20 : vector<1x128xf32>
    %c0_12 = arith.constant 0 : index
    %23 = arith.index_cast %5 : i32 to index
    %24 = vector.load %arg6[%c0_12, %23] : memref<1x128xf32, #tpu.memory_space<vmem>>, vector<1x128xf32>
    tpu.vector_store %arg6[%c0_12, %23], %22 {strides = array<i32>} : memref<1x128xf32, #tpu.memory_space<vmem>>, vector<1x128xf32>,
    %c1_i32 = arith.constant 1 : i32
    return
  }
  func.func @transform_0(%arg0: i32) -> (i32, i32) {
    %c0_i32 = arith.constant 0 : i32
    %c0_i32_0 = arith.constant 0 : i32
    return %arg0, %c0_i32 : i32, i32
  }
  func.func @transform_1(%arg0: i32) -> (i32, i32) {
    %c0_i32 = arith.constant 0 : i32
    %c0_i32_0 = arith.constant 0 : i32
    %c0_i32_1 = arith.constant 0 : i32
    return %c0_i32, %c0_i32_0 : i32, i32
  }
  func.func @transform_2(%arg0: i32) -> (i32, i32) {
    %c0_i32 = arith.constant 0 : i32
    %c0_i32_0 = arith.constant 0 : i32
    %c0_i32_1 = arith.constant 0 : i32
    return %c0_i32, %c0_i32_0 : i32, i32
  }
  func.func @transform_3(%arg0: i32) -> (i32, i32) {
    %c0_i32 = arith.constant 0 : i32
    %c0_i32_0 = arith.constant 0 : i32
    %c0_i32_1 = arith.constant 0 : i32
    return %c0_i32, %c0_i32_0 : i32, i32
  }
  func.func @transform_4(%arg0: i32) -> i32 {
    %c0_i32 = arith.constant 0 : i32
    %c0_i32_0 = arith.constant 0 : i32
    return %c0_i32 : i32
  }
  func.func @transform_5(%arg0: i32) -> (i32, i32) {
    %c0_i32 = arith.constant 0 : i32
    %c0_i32_0 = arith.constant 0 : i32
    return %c0_i32, %arg0 : i32, i32
  }
}

</mosaic_0001>

<llo_original>
// kernel: tpu_custom_call.1
$region0: #{tpu_custom_call.1}
  #allocation0 [shape = 'u32[]', space=smem, size = 0x4, offset = 0x4, fixed_abs, tag = 'smem constant byte address 0x4 - core index']
  #allocation1 [shape = 'u32[144,128]{1,0:T(1,128)}', space=vmem, size = 0x12000, scoped, tag = 'internal scratch']
  #allocation2 [shape = 'f32[1]{0:T(128)S(6)}', space=smem, size = 0x200, scoped, tag = 'scoped memory for tpu_custom_call.1']
  %s0 = inlined_call_operand.vmem [shape: f32[128,4], index: 0, kind: input, shape index: {}]
  %s1 = inlined_call_operand.vmem [shape: f32[4,128], index: 1, kind: input, shape index: {}]
  %s2 = inlined_call_operand.vmem [shape: f32[1,128], index: 2, kind: input, shape index: {}]
  %s3 = inlined_call_operand.vmem [shape: f32[1,128], index: 3, kind: input, shape index: {}]
  %s4 = inlined_call_operand.<no memory space> [shape: f32[1], index: 4, kind: input, shape index: {}]
  %s5 = inlined_call_operand.hbm [shape: f32[1,128], index: 5, kind: output, shape index: {}]
  %s6 = sld [smem:[#allocation0]]
  $region30: #{tpu_custom_call.1} parent=0
    _
  %s8 = ssub.s32 1, %s6
  %s9 = scalar_select 0, %s8, %s6
  %10 = sst [smem:[#allocation2]] %s4
  $region1: #{tpu_custom_call.1} parent=0
    #allocation3 [shape = 'u8[512]{0}', space=vmem, size = 0x400, scoped, tag = 'output window, operand 0, single buffered']
    #allocation4 [shape = 's32[1]{0}', space=sflag, size = 0x4, scoped, tag = 'scoped memory for tpu_custom_call.1']
    %11 = vsyncpa [#allocation4], 0
    // Predicated region
    $region2: #{tpu_custom_call.1} parent=1 // pred_check
      _
    $region3: #{tpu_custom_call.1} parent=1 // pred_check_branch
      %13 = sbr.rel (0) target = $region5
    $region4: #{tpu_custom_call.1} parent=1 // pred_region
      _
    $region5: #{tpu_custom_call.1} parent=1 // pred_fallthru
      _
    // Predicated region
    $region6: #{tpu_custom_call.1} parent=1 // pred_check
      _
    $region7: #{tpu_custom_call.1} parent=1 // pred_check_branch
      %15 = sbr.rel (0) target = $region9
    $region8: #{tpu_custom_call.1} parent=1 // pred_region
      _
    $region9: #{tpu_custom_call.1} parent=1 // pred_fallthru
      _
    // Predicated region
    $region10: #{tpu_custom_call.1} parent=1 // pred_check
      _
    $region11: #{tpu_custom_call.1} parent=1 // pred_check_branch
      %17 = sbr.rel (0) target = $region13
    $region12: #{tpu_custom_call.1} parent=1 // pred_region
      _
    $region13: #{tpu_custom_call.1} parent=1 // pred_fallthru
      _
    // Predicated region
    $region14: #{tpu_custom_call.1} parent=1 // pred_check
      _
    $region15: #{tpu_custom_call.1} parent=1 // pred_check_branch
      %19 = sbr.rel (0) target = $region17
    $region16: #{tpu_custom_call.1} parent=1 // pred_region
      _
    $region17: #{tpu_custom_call.1} parent=1 // pred_fallthru
      _
    // Predicated region
    $region18: #{tpu_custom_call.1} parent=1 // pred_check
      _
    $region19: #{tpu_custom_call.1} parent=1 // pred_check_branch
      %21 = sbr.rel (0) target = $region21
    $region20: #{tpu_custom_call.1} parent=1 // pred_region
      _
    $region21: #{tpu_custom_call.1} parent=1 // pred_fallthru
      _
    %v22 = vld [vmem:[%s1] sm:$0xf]
    %v23 = vld [vmem:[%s2] sm:$0x1]
    %v24 = vld [vmem:[%s3] sm:$0x1]
    %s25 = sld [smem:[#allocation2]]
    %v26 = vld [vmem:[%s0] sm:$0xff]
    %v27 = vld [vmem:[%s0 + $0x8] sm:$0xff]
    %v28 = vld [vmem:[%s0 + $0x10] sm:$0xff]
    %v29 = vld [vmem:[%s0 + $0x18] sm:$0xff]
    %v30 = vld [vmem:[%s0 + $0x20] sm:$0xff]
    %v31 = vld [vmem:[%s0 + $0x28] sm:$0xff]
    %v32 = vld [vmem:[%s0 + $0x30] sm:$0xff]
    %v33 = vld [vmem:[%s0 + $0x38] sm:$0xff]
    %v34 = vld [vmem:[%s0 + $0x40] sm:$0xff]
    %v35 = vld [vmem:[%s0 + $0x48] sm:$0xff]
    %v36 = vld [vmem:[%s0 + $0x50] sm:$0xff]
    %v37 = vld [vmem:[%s0 + $0x58] sm:$0xff]
    %v38 = vld [vmem:[%s0 + $0x60] sm:$0xff]
    %v39 = vld [vmem:[%s0 + $0x68] sm:$0xff]
    %v40 = vld [vmem:[%s0 + $0x70] sm:$0xff]
    %v41 = vld [vmem:[%s0 + $0x78] sm:$0xff]
    %v43 = vlaneseq
    %v44 = vshrl.u32 %v43, 7
    %v45 = vsub.s32 0, %v44
    %v46 = vrot.slane %v23, %v45
    %vm48 = vcmask 31744
    %v50 = vsel %vm48, %v26, 0
    %v53 = vsel %vm48, %v27, 0
    %v56 = vsel %vm48, %v28, 0
    %v59 = vsel %vm48, %v29, 0
    %v62 = vsel %vm48, %v30, 0
    %v65 = vsel %vm48, %v31, 0
    %v68 = vsel %vm48, %v32, 0
    %v71 = vsel %vm48, %v33, 0
    %v74 = vsel %vm48, %v34, 0
    %v77 = vsel %vm48, %v35, 0
    %v80 = vsel %vm48, %v36, 0
    %v83 = vsel %vm48, %v37, 0
    %v86 = vsel %vm48, %v38, 0
    %v89 = vsel %vm48, %v39, 0
    %v92 = vsel %vm48, %v40, 0
    %v95 = vsel %vm48, %v41, 0
    %vm97 = vcmask 1043456
    %v99 = vsel %vm97, %v22, 0
    %101 = vmatprep.subr.mxu0 0.0
    %102 = vmatpush1.msra.mxu0 0.0
    %103 = vmatprep.subr.mxu0 0.0
    %104 = vmatpush1.msra.mxu0 0.0
    %105 = vmatprep.subr.mxu0 0.0
    %106 = vmatpush1.msra.mxu0 0.0
    %107 = vmatprep.subr.mxu0 0.0
    %108 = vmatpush1.msra.mxu0 0.0
    %109 = vmatprep.subr.mxu0 0.0
    %110 = vmatpush1.msra.mxu0 0.0
    %111 = vmatprep.subr.mxu0 0.0
    %112 = vmatpush1.msra.mxu0 0.0
    %113 = vmatprep.subr.mxu0 0.0
    %114 = vmatpush1.msra.mxu0 0.0
    %115 = vmatprep.subr.mxu0 0.0
    %116 = vmatpush1.msra.mxu0 0.0
    %117 = vmatprep.subr.mxu0 0.0
    %118 = vmatpush1.msra.mxu0 0.0
    %119 = vmatprep.subr.mxu0 0.0
    %120 = vmatpush1.msra.mxu0 0.0
    %121 = vmatprep.subr.mxu0 0.0
    %122 = vmatpush1.msra.mxu0 0.0
    %123 = vmatprep.subr.mxu0 0.0
    %124 = vmatpush1.msra.mxu0 0.0
    %125 = vmatprep.subr.mxu0 0.0
    %126 = vmatpush1.msra.mxu0 0.0
    %127 = vmatprep.subr.mxu0 0.0
    %128 = vmatpush1.msra.mxu0 0.0
    %129 = vmatprep.subr.mxu0 0.0
    %130 = vmatpush1.msra.mxu0 0.0
    %131 = vmatprep.subr.mxu0 0.0
    %132 = vmatpush1.msra.mxu0 %v99
    %133 = vmatprep.subr.mxu0 0.0
    %134 = vmatpush2.msra.mxu0 0.0
    %135 = vmatprep.subr.mxu0 0.0
    %136 = vmatpush2.msra.mxu0 0.0
    %137 = vmatprep.subr.mxu0 0.0
    %138 = vmatpush2.msra.mxu0 0.0
    %139 = vmatprep.subr.mxu0 0.0
    %140 = vmatpush2.msra.mxu0 0.0
    %141 = vmatprep.subr.mxu0 0.0
    %142 = vmatpush2.msra.mxu0 0.0
    %143 = vmatprep.subr.mxu0 0.0
    %144 = vmatpush2.msra.mxu0 0.0
    %145 = vmatprep.subr.mxu0 0.0
    %146 = vmatpush2.msra.mxu0 0.0
    %147 = vmatprep.subr.mxu0 0.0
    %148 = vmatpush2.msra.mxu0 0.0
    %149 = vmatprep.subr.mxu0 0.0
    %150 = vmatpush2.msra.mxu0 0.0
    %151 = vmatprep.subr.mxu0 0.0
    %152 = vmatpush2.msra.mxu0 0.0
    %153 = vmatprep.subr.mxu0 0.0
    %154 = vmatpush2.msra.mxu0 0.0
    %155 = vmatprep.subr.mxu0 0.0
    %156 = vmatpush2.msra.mxu0 0.0
    %157 = vmatprep.subr.mxu0 0.0
    %158 = vmatpush2.msra.mxu0 0.0
    %159 = vmatprep.subr.mxu0 0.0
    %160 = vmatpush2.msra.mxu0 0.0
    %161 = vmatprep.subr.mxu0 0.0
    %162 = vmatpush2.msra.mxu0 0.0
    %163 = vmatprep.subr.mxu0 0.0
    %164 = vmatpush2.msra.mxu0 0.0
    %165 = vmatprep.mubr.f32.mxu0 0.0
    %166 = vmatmul.mubr.f32.gmra.mxu0 %v50
    %v167 = vpop.f32.mrf.mxu0
    %v168 = vadd.f32 %v46, %v167
    %v169 = vpop.f32.mrf.mxu0
    %170 = vmatprep.mubr.f32.mxu0 0.0
    %171 = vmatmul.mubr.f32.gmra.mxu0 %v53
    %v172 = vpop.f32.mrf.mxu0
    %v173 = vadd.f32 %v46, %v172
    %v174 = vpop.f32.mrf.mxu0
    %175 = vmatprep.mubr.f32.mxu0 0.0
    %176 = vmatmul.mubr.f32.gmra.mxu0 %v56
    %v177 = vpop.f32.mrf.mxu0
    %v178 = vadd.f32 %v46, %v177
    %v179 = vpop.f32.mrf.mxu0
    %180 = vmatprep.mubr.f32.mxu0 0.0
    %181 = vmatmul.mubr.f32.gmra.mxu0 %v59
    %v182 = vpop.f32.mrf.mxu0
    %v183 = vadd.f32 %v46, %v182
    %v184 = vpop.f32.mrf.mxu0
    %185 = vmatprep.mubr.f32.mxu0 0.0
    %186 = vmatmul.mubr.f32.gmra.mxu0 %v62
    %v187 = vpop.f32.mrf.mxu0
    %v188 = vadd.f32 %v46, %v187
    %v189 = vpop.f32.mrf.mxu0
    %190 = vmatprep.mubr.f32.mxu0 0.0
    %191 = vmatmul.mubr.f32.gmra.mxu0 %v65
    %v192 = vpop.f32.mrf.mxu0
    %v193 = vadd.f32 %v46, %v192
    %v194 = vpop.f32.mrf.mxu0
    %195 = vmatprep.mubr.f32.mxu0 0.0
    %196 = vmatmul.mubr.f32.gmra.mxu0 %v68
    %v197 = vpop.f32.mrf.mxu0
    %v198 = vadd.f32 %v46, %v197
    %v199 = vpop.f32.mrf.mxu0
    %200 = vmatprep.mubr.f32.mxu0 0.0
    %201 = vmatmul.mubr.f32.gmra.mxu0 %v71
    %v202 = vpop.f32.mrf.mxu0
    %v203 = vadd.f32 %v46, %v202
    %v204 = vpop.f32.mrf.mxu0
    %205 = vmatprep.mubr.f32.mxu0 0.0
    %206 = vmatmul.mubr.f32.gmra.mxu0 %v74
    %v207 = vpop.f32.mrf.mxu0
    %v208 = vadd.f32 %v46, %v207
    %v209 = vpop.f32.mrf.mxu0
    %210 = vmatprep.mubr.f32.mxu0 0.0
    %211 = vmatmul.mubr.f32.gmra.mxu0 %v77
    %v212 = vpop.f32.mrf.mxu0
    %v213 = vadd.f32 %v46, %v212
    %v214 = vpop.f32.mrf.mxu0
    %215 = vmatprep.mubr.f32.mxu0 0.0
    %216 = vmatmul.mubr.f32.gmra.mxu0 %v80
    %v217 = vpop.f32.mrf.mxu0
    %v218 = vadd.f32 %v46, %v217
    %v219 = vpop.f32.mrf.mxu0
    %220 = vmatprep.mubr.f32.mxu0 0.0
    %221 = vmatmul.mubr.f32.gmra.mxu0 %v83
    %v222 = vpop.f32.mrf.mxu0
    %v223 = vadd.f32 %v46, %v222
    %v224 = vpop.f32.mrf.mxu0
    %225 = vmatprep.mubr.f32.mxu0 0.0
    %226 = vmatmul.mubr.f32.gmra.mxu0 %v86
    %v227 = vpop.f32.mrf.mxu0
    %v228 = vadd.f32 %v46, %v227
    %v229 = vpop.f32.mrf.mxu0
    %230 = vmatprep.mubr.f32.mxu0 0.0
    %231 = vmatmul.mubr.f32.gmra.mxu0 %v89
    %v232 = vpop.f32.mrf.mxu0
    %v233 = vadd.f32 %v46, %v232
    %v234 = vpop.f32.mrf.mxu0
    %235 = vmatprep.mubr.f32.mxu0 0.0
    %236 = vmatmul.mubr.f32.gmra.mxu0 %v92
    %v237 = vpop.f32.mrf.mxu0
    %v238 = vadd.f32 %v46, %v237
    %v239 = vpop.f32.mrf.mxu0
    %240 = vmatprep.mubr.f32.mxu0 0.0
    %241 = vmatmul.mubr.f32.gmra.mxu0 %v95
    %v242 = vpop.f32.mrf.mxu0
    %v243 = vadd.f32 %v46, %v242
    %v244 = vpop.f32.mrf.mxu0
    %245 = vdwg.mxu0
    %v246 = vmax.f32 %v168, 0.0
    %v247 = vmax.f32 %v173, 0.0
    %v248 = vmax.f32 %v178, 0.0
    %v249 = vmax.f32 %v183, 0.0
    %v250 = vmax.f32 %v188, 0.0
    %v251 = vmax.f32 %v193, 0.0
    %v252 = vmax.f32 %v198, 0.0
    %v253 = vmax.f32 %v203, 0.0
    %v254 = vmax.f32 %v208, 0.0
    %v255 = vmax.f32 %v213, 0.0
    %v256 = vmax.f32 %v218, 0.0
    %v257 = vmax.f32 %v223, 0.0
    %v258 = vmax.f32 %v228, 0.0
    %v259 = vmax.f32 %v233, 0.0
    %v260 = vmax.f32 %v238, 0.0
    %v261 = vmax.f32 %v243, 0.0
    %v262 = vstv %s25
    %263 = vmatprep.subr.mxu0 0.0
    %264 = vmatpush1.xpose.msra.mxu0 %v261
    %265 = vmatprep.subr.mxu0 0.0
    %266 = vmatpush1.xpose.msra.mxu0 %v260
    %267 = vmatprep.subr.mxu0 0.0
    %268 = vmatpush1.xpose.msra.mxu0 %v259
    %269 = vmatprep.subr.mxu0 0.0
    %270 = vmatpush1.xpose.msra.mxu0 %v258
    %271 = vmatprep.subr.mxu0 0.0
    %272 = vmatpush1.xpose.msra.mxu0 %v257
    %273 = vmatprep.subr.mxu0 0.0
    %274 = vmatpush1.xpose.msra.mxu0 %v256
    %275 = vmatprep.subr.mxu0 0.0
    %276 = vmatpush1.xpose.msra.mxu0 %v255
    %277 = vmatprep.subr.mxu0 0.0
    %278 = vmatpush1.xpose.msra.mxu0 %v254
    %279 = vmatprep.subr.mxu0 0.0
    %280 = vmatpush1.xpose.msra.mxu0 %v253
    %281 = vmatprep.subr.mxu0 0.0
    %282 = vmatpush1.xpose.msra.mxu0 %v252
    %283 = vmatprep.subr.mxu0 0.0
    %284 = vmatpush1.xpose.msra.mxu0 %v251
    %285 = vmatprep.subr.mxu0 0.0
    %286 = vmatpush1.xpose.msra.mxu0 %v250
    %287 = vmatprep.subr.mxu0 0.0
    %288 = vmatpush1.xpose.msra.mxu0 %v249
    %289 = vmatprep.subr.mxu0 0.0
    %290 = vmatpush1.xpose.msra.mxu0 %v248
    %291 = vmatprep.subr.mxu0 0.0
    %292 = vmatpush1.xpose.msra.mxu0 %v247
    %293 = vmatprep.subr.mxu0 0.0
    %294 = vmatpush1.xpose.msra.mxu0 %v246
    %295 = vmatprep.subr.mxu0 0.0
    %296 = vmatpush2.xpose.msra.mxu0 0.0
    %297 = vmatprep.subr.mxu0 0.0
    %298 = vmatpush2.xpose.msra.mxu0 0.0
    %299 = vmatprep.subr.mxu0 0.0
    %300 = vmatpush2.xpose.msra.mxu0 0.0
    %301 = vmatprep.subr.mxu0 0.0
    %302 = vmatpush2.xpose.msra.mxu0 0.0
    %303 = vmatprep.subr.mxu0 0.0
    %304 = vmatpush2.xpose.msra.mxu0 0.0
    %305 = vmatprep.subr.mxu0 0.0
    %306 = vmatpush2.xpose.msra.mxu0 0.0
    %307 = vmatprep.subr.mxu0 0.0
    %308 = vmatpush2.xpose.msra.mxu0 0.0
    %309 = vmatprep.subr.mxu0 0.0
    %310 = vmatpush2.xpose.msra.mxu0 0.0
    %311 = vmatprep.subr.mxu0 0.0
    %312 = vmatpush2.xpose.msra.mxu0 0.0
    %313 = vmatprep.subr.mxu0 0.0
    %314 = vmatpush2.xpose.msra.mxu0 0.0
    %315 = vmatprep.subr.mxu0 0.0
    %316 = vmatpush2.xpose.msra.mxu0 0.0
    %317 = vmatprep.subr.mxu0 0.0
    %318 = vmatpush2.xpose.msra.mxu0 0.0
    %319 = vmatprep.subr.mxu0 0.0
    %320 = vmatpush2.xpose.msra.mxu0 0.0
    %321 = vmatprep.subr.mxu0 0.0
    %322 = vmatpush2.xpose.msra.mxu0 0.0
    %323 = vmatprep.subr.mxu0 0.0
    %324 = vmatpush2.xpose.msra.mxu0 0.0
    %325 = vmatprep.subr.mxu0 0.0
    %326 = vmatpush2.xpose.msra.mxu0 0.0
    %327 = vmatprep.mubr.f32.mxu0 0.0
    %328 = vmatmul.mubr.f32.gmra.mxu0 %v24
    %v329 = vpop.f32.mrf.mxu0
    %v330 = vadd.f32 %v262, %v329
    %v331 = vpop.f32.mrf.mxu0
    %332 = vdwg.mxu0
    %v333 = vsub.f32 0.0, %v330
    %v334 = vmul.f32 %v333, 1.442695
    %v335 = vpow.pop %v334
    %v336 = vadd.f32 %v335, 1.0
    %v337 = vrcp.pop %v336
    %v338 = vmul.f32 1.0, %v337
    %339 = vst [vmem:[#allocation3] sm:$0x1] %v338
    // Predicated region
    $region22: #{tpu_custom_call.1} parent=1 // pred_check
      _
    $region23: #{tpu_custom_call.1} parent=1 // pred_check_branch
      %341 = sbr.rel (0) target = $region25
    $region24: #{tpu_custom_call.1} parent=1 // pred_region
      %s343 = ssub.s32 16, 16
      %344 = vsyncadd [#allocation4], %s343
      %s346 = sshll.u32 [#allocation3], 4
      %s347 = int_to_ptr.vmem [resolvable:$true] %s346
      %349 = dma.vmem_to_hbm [thread:$0]  %s347, 16, %s5, [#allocation4]
    $region25: #{tpu_custom_call.1} parent=1 // pred_fallthru
      _
    // Predicated region
    $region26: #{tpu_custom_call.1} parent=1 // pred_check
      _
    $region27: #{tpu_custom_call.1} parent=1 // pred_check_branch
      %351 = sbr.rel (0) target = $region29
    $region28: #{tpu_custom_call.1} parent=1 // pred_region
      %352 = dma.done [#allocation4], 16
    $region29: #{tpu_custom_call.1} parent=1 // pred_fallthru
      _
    %353 = vsyncpa [#allocation4], 1

</llo_original>
